<compile_context>
chip_gen: v5e
topology: v5e:2x2
jax: 0.10.0
libtpu: 0.0.40
codegen_flags: <defaults>
</compile_context>

<pallas_src>
import functools

import jax
import jax.numpy as jnp
from jax import lax
from jax.experimental import pallas as pl
from jax.experimental.pallas import tpu as pltpu

_MIB = 1024 * 1024


def _milnce_tile_kernel(v_ref, t_ref, nom_ref, row_ref, col_ref, *,
                        vid_group, txt_group):
    """One video-row tile of the MIL-NCE statistics.

    v_ref   : [tB, D]  tile of video embeddings (rows i*tB .. i*tB+tB-1)
    t_ref   : [T,  D]  ALL unique text embeddings (resident, constant index map)
    nom_ref : [tB, 1]  per-row LSE over the positive (diagonal-block) entries
    row_ref : [tB, 1]  per-row LSE over the whole row of s (before +log(rep))
    col_ref : [8,  T]  per-tile, per-column partial LSE over this tile's rows
                       (8 identical sublane copies keep the BlockSpec legal)
    """
    tB = v_ref.shape[0]
    T = t_ref.shape[0]
    i = pl.program_id(0)

    # Similarity tile [tB, T]; contract on the feature axis of both operands so
    # no transposed copy of t is materialized.  f32 accumulation on the MXU.
    s = lax.dot_general(
        v_ref[...], t_ref[...],
        dimension_numbers=(((1,), (1,)), ((), ())),
        preferred_element_type=jnp.float32)

    # Positive-pair mask via range compares (no integer vector divide).
    row_g = lax.broadcasted_iota(jnp.int32, (tB, T), 0) + i * tB   # global row id
    col = lax.broadcasted_iota(jnp.int32, (tB, T), 1)
    if vid_group > 1:
        # num_clip consecutive video rows share unique text column r // vid_group
        mask = (row_g >= col * vid_group) & (row_g < (col + 1) * vid_group)
    elif txt_group > 1:
        # txt_group captions per video: positive columns [r*k, (r+1)*k)
        mask = (col >= row_g * txt_group) & (col < (row_g + 1) * txt_group)
    else:
        mask = row_g == col

    # ---- single exp pass -------------------------------------------------
    m_row = jnp.max(s, axis=1, keepdims=True)                      # [tB, 1]
    e = jnp.exp(s - m_row)                                         # [tB, T]

    # NOTE: if the positive entries sit >~88 below the row max they underflow
    # (standard online-softmax behaviour); fine for real embedding scales.
    nom_sum = jnp.sum(jnp.where(mask, e, 0.0), axis=1, keepdims=True)
    row_sum = jnp.sum(e, axis=1, keepdims=True)
    nom_ref[...] = jnp.log(nom_sum) + m_row                        # [tB, 1]
    row_ref[...] = jnp.log(row_sum) + m_row                        # [tB, 1]

    # Per-column partial LSE over this tile's rows, shared tile-max base so the
    # already-computed e tensor is reused (rescale rows, no second big exp).
    m_tile = jnp.max(m_row, axis=0, keepdims=True)                 # [1, 1]
    es = e * jnp.exp(m_row - m_tile)                               # [tB, T]
    col_sum = jnp.sum(es, axis=0, keepdims=True)                   # [1, T]
    col_lse = jnp.log(col_sum) + m_tile                            # [1, T]
    col_ref[...] = jnp.broadcast_to(col_lse, col_ref.shape)        # (8, T) copies


def _vmem_estimate_bytes(row_tile, T, D, in_itemsize):
    """Rough per-step VMEM footprint (double-buffered I/O + f32 temporaries)."""
    text = 2 * T * D * in_itemsize                 # resident text, 2 buffers
    vid = 2 * row_tile * D * in_itemsize           # video tile, 2 buffers
    outs = 2 * (2 * row_tile + 8 * T) * 4          # tiny per-tile outputs
    tmps = 5 * row_tile * T * 4                    # s, e, es, mask, slack (f32)
    return text + vid + outs + tmps


def _pick_row_tile(batch, T, D, in_itemsize, budget_bytes):
    """Largest power-of-two row tile that divides batch and fits the budget."""
    for t in (512, 256, 128, 64, 32, 16, 8):
        if (t <= batch and batch % t == 0
                and _vmem_estimate_bytes(t, T, D, in_itemsize) <= budget_bytes):
            return t
    return batch  # single full-size tile (always BlockSpec-legal)


def mil_nce_loss(video_embd, text_embd, *, row_tile=None):
    """JAX wrapper mirroring MILNCELoss.forward semantics (loss scalar, f32)."""
    video_embd = jnp.asarray(video_embd)   # dtype passes through (bf16 friendly)
    text_embd = jnp.asarray(text_embd)
    B, D = video_embd.shape
    T, Dt = text_embd.shape
    if D != Dt:
        raise ValueError(f"feature dims differ: video {D} vs text {Dt}")

    # Mirror forward(): num_clip = B // T with repeat_interleave when > 1.
    # We never materialize the repeat; the kernel uses the unique text rows.
    if B >= T:
        if B % T != 0:
            raise ValueError(f"video batch {B} not divisible by text batch {T}")
        vid_group = B // T          # num_clip (>= 1), k == 1 in the full matrix
        txt_group = 1
    else:
        if T % B != 0:
            raise ValueError(f"text batch {T} not divisible by video batch {B}")
        vid_group = 1
        txt_group = T // B          # captions per video (k in the torch view)

    itemsize = jnp.dtype(video_embd.dtype).itemsize
    if row_tile is None:
        row_tile = _pick_row_tile(B, T, D, itemsize, budget_bytes=24 * _MIB)
    if B % row_tile != 0:
        raise ValueError(f"row_tile {row_tile} must divide batch {B}")
    num_tiles = B // row_tile

    vmem_limit = int(min(
        max(32 * _MIB, 1.25 * _vmem_estimate_bytes(row_tile, T, D, itemsize)),
        64 * _MIB))

    cost = pl.CostEstimate(
        flops=2 * B * T * D + 8 * B * T,
        transcendentals=B * T + 2 * B + num_tiles * T,
        bytes_accessed=(B * D + num_tiles * T * D) * itemsize
                       + (2 * B + 8 * num_tiles * T) * 4,
    )

    kernel = functools.partial(
        _milnce_tile_kernel, vid_group=vid_group, txt_group=txt_group)

    nom, row_lse, col_parts = pl.pallas_call(
        kernel,
        out_shape=(
            jax.ShapeDtypeStruct((B, 1), jnp.float32),
            jax.ShapeDtypeStruct((B, 1), jnp.float32),
            jax.ShapeDtypeStruct((num_tiles * 8, T), jnp.float32),
        ),
        grid=(num_tiles,),
        in_specs=[
            pl.BlockSpec((row_tile, D), lambda i: (i, 0)),   # video row tile
            pl.BlockSpec((T, D), lambda i: (0, 0)),          # full text, resident
        ],
        out_specs=(
            pl.BlockSpec((row_tile, 1), lambda i: (i, 0)),
            pl.BlockSpec((row_tile, 1), lambda i: (i, 0)),
            pl.BlockSpec((8, T), lambda i: (i, 0)),
        ),
        compiler_params=pltpu.CompilerParams(
            dimension_semantics=("parallel",),               # v7x: 2 TCs split tiles
            vmem_limit_bytes=vmem_limit,
        ),
        cost_estimate=cost,
    )(video_embd, text_embd)

    # ---- tiny O(B + T) epilogue in plain JAX ------------------------------
    nom = nom[:, 0]                                            # [B]
    row_full = row_lse[:, 0]                                   # [B]
    if vid_group > 1:
        # each unique text column appears vid_group times in the full row
        row_full = row_full + jnp.log(jnp.float32(vid_group))

    col_parts = col_parts.reshape(num_tiles, 8, T)[:, 0, :]    # [num_tiles, T]
    col_lse = jax.scipy.special.logsumexp(col_parts, axis=0)   # [T]
    if vid_group > 1:
        colblock = jnp.repeat(col_lse, vid_group)              # column i//num_clip
    elif txt_group > 1:
        colblock = jax.scipy.special.logsumexp(
            col_lse.reshape(B, txt_group), axis=1)             # groups of k columns
    else:
        colblock = col_lse

    # denominator = LSE(row ∪ column-block); diagonal double-count preserved
    den = jnp.logaddexp(row_full, colblock)
    return jnp.mean(den - nom)


def _mil_nce_loss_ref(video_embd, text_embd):
    """Pure-JAX reference replicating the torch code path exactly."""
    video_embd = jnp.asarray(video_embd, jnp.float32)
    text_embd = jnp.asarray(text_embd, jnp.float32)
    B = video_embd.shape[0]
    num_clip = B // text_embd.shape[0]
    if num_clip > 1:
        text_embd = jnp.repeat(text_embd, num_clip, axis=0)
    x = video_embd @ text_embd.T
    x = x.reshape(B, B, -1)
    y = jnp.eye(B, dtype=x.dtype)[:, :, None]
    nominator = (x * y).sum(axis=1)
    nominator = jax.scipy.special.logsumexp(nominator, axis=1)
    denominator = jnp.concatenate(
        [x, jnp.transpose(x, (1, 0, 2))], axis=1).reshape(B, -1)
    denominator = jax.scipy.special.logsumexp(denominator, axis=1)
    return jnp.mean(denominator - nominator)


if __name__ == "__main__":
    key = jax.random.PRNGKey(0)
    k1, k2, k3, k4, k5, k6, k7, k8 = jax.random.split(key, 8)

    # (1) clips case (num_clip = 2): video [8, 32], text [4, 32]
    video = jax.random.normal(k1, (8, 32), dtype=jnp.float32)
    text = jax.random.normal(k2, (4, 32), dtype=jnp.float32)
    got = jax.block_until_ready(mil_nce_loss(video, text))
    ref = jax.block_until_ready(_mil_nce_loss_ref(video, text))
    assert jnp.isfinite(got), ("clips", got)
    assert jnp.allclose(got, ref, rtol=1e-4, atol=1e-4), ("clips", got, ref)

    # (2) captions case (2 captions per video): video [8, 32], text [16, 32]
    video = jax.random.normal(k3, (8, 32), dtype=jnp.float32)
    text = jax.random.normal(k4, (16, 32), dtype=jnp.float32)
    got = jax.block_until_ready(mil_nce_loss(video, text))
    ref = jax.block_until_ready(_mil_nce_loss_ref(video, text))
    assert jnp.isfinite(got), ("captions", got)
    assert jnp.allclose(got, ref, rtol=1e-4, atol=1e-4), ("captions", got, ref)

    # (3) one-to-one case (B == T), auto row tile
    video = jax.random.normal(k7, (16, 32), dtype=jnp.float32)
    text = jax.random.normal(k8, (16, 32), dtype=jnp.float32)
    got = jax.block_until_ready(mil_nce_loss(video, text))
    ref = jax.block_until_ready(_mil_nce_loss_ref(video, text))
    assert jnp.isfinite(got), ("one-to-one", got)
    assert jnp.allclose(got, ref, rtol=1e-4, atol=1e-4), ("one-to-one", got, ref)

    # (4) multi-tile path: 4 row tiles of 8, cross-tile column-LSE combine
    video = jax.random.normal(k5, (32, 64), dtype=jnp.float32)
    text = jax.random.normal(k6, (16, 64), dtype=jnp.float32)
    got = jax.block_until_ready(mil_nce_loss(video, text, row_tile=8))
    ref = jax.block_until_ready(_mil_nce_loss_ref(video, text))
    assert jnp.isfinite(got), ("multi-tile", got)
    assert jnp.allclose(got, ref, rtol=1e-4, atol=1e-4), ("multi-tile", got, ref)

    # (5) bf16 inputs (MXU-native), compared against an f32 reference on the
    #     same bf16-rounded values (kernel accumulates in f32).
    v_bf, t_bf = video.astype(jnp.bfloat16), text.astype(jnp.bfloat16)
    got = jax.block_until_ready(mil_nce_loss(v_bf, t_bf, row_tile=8))
    ref = jax.block_until_ready(
        _mil_nce_loss_ref(v_bf.astype(jnp.float32), t_bf.astype(jnp.float32)))
    assert jnp.isfinite(got), ("bf16", got)
    assert jnp.allclose(got, ref, rtol=1e-3, atol=1e-3), ("bf16", got, ref)

    print("KERNEL_OK")
</pallas_src>

<mosaic_0001>
module attributes {stable_mosaic.version = 11 : i64} {
  func.func @_milnce_tile_kernel(%arg0: i32, %arg1: memref<8x32xf32, #tpu.memory_space<vmem>>, %arg2: memref<4x32xf32, #tpu.memory_space<vmem>>, %arg3: memref<8x1xf32, #tpu.memory_space<vmem>>, %arg4: memref<8x1xf32, #tpu.memory_space<vmem>>, %arg5: memref<8x4xf32, #tpu.memory_space<vmem>>) attributes {dimension_semantics = [#tpu.dimension_semantics<parallel>], iteration_bounds = array<i64: 1>, scalar_prefetch = 0 : i64, scratch_operands = 0 : i64, tpu.core_type = #tpu.core_type<tc>, window_params = [{transform_indices = @transform_0, window_bounds = array<i64: 8, 32>}, {pipeline_mode = #tpu.pipeline_mode<synchronous>, transform_indices = @transform_1, window_bounds = array<i64: 4, 32>}, {transform_indices = @transform_2, window_bounds = array<i64: 8, 1>}, {transform_indices = @transform_3, window_bounds = array<i64: 8, 1>}, {transform_indices = @transform_4, window_bounds = array<i64: 8, 4>}]} {
    %c0 = arith.constant 0 : index
    %c0_0 = arith.constant 0 : index
    %0 = vector.load %arg1[%c0, %c0_0] : memref<8x32xf32, #tpu.memory_space<vmem>>, vector<8x32xf32>
    %c0_1 = arith.constant 0 : index
    %c0_2 = arith.constant 0 : index
    %1 = vector.load %arg2[%c0_1, %c0_2] : memref<4x32xf32, #tpu.memory_space<vmem>>, vector<4x32xf32>
    %cst = arith.constant dense<0.000000e+00> : vector<8x4xf32>
    %2 = tpu.matmul %0, %1, %cst {dimension_numbers = #tpu.dot_dimension_numbers<[1], [1], [0], [0], [0, 0, 1, 0], [], []>} : vector<8x32xf32>, vector<4x32xf32>, vector<8x4xf32> -> vector<8x4xf32>
    %3 = tpu.iota {dimensions = array<i32: 0>} : vector<8x4xi32>
    %c8_i32 = arith.constant 8 : i32
    %4 = arith.muli %arg0, %c8_i32 : i32
    %5 = vector.broadcast %4 : i32 to vector<8x4xi32>
    %6 = arith.addi %3, %5 : vector<8x4xi32>
    %7 = tpu.iota {dimensions = array<i32: 1>} : vector<8x4xi32>
    %c2_i32 = arith.constant 2 : i32
    %8 = vector.broadcast %c2_i32 : i32 to vector<8x4xi32>
    %9 = arith.muli %7, %8 : vector<8x4xi32>
    %10 = arith.cmpi sge, %6, %9 : vector<8x4xi32>
    %c1_i32 = arith.constant 1 : i32
    %11 = vector.broadcast %c1_i32 : i32 to vector<8x4xi32>
    %12 = arith.addi %7, %11 : vector<8x4xi32>
    %c2_i32_3 = arith.constant 2 : i32
    %13 = vector.broadcast %c2_i32_3 : i32 to vector<8x4xi32>
    %14 = arith.muli %12, %13 : vector<8x4xi32>
    %15 = arith.cmpi slt, %6, %14 : vector<8x4xi32>
    %16 = arith.andi %10, %15 : vector<8x4xi1>
    %cst_4 = arith.constant dense<0xFF800000> : vector<8xf32>
    %17 = vector.multi_reduction <maximumf>, %2, %cst_4 [1] : vector<8x4xf32> to vector<8xf32>
    %18 = vector.shape_cast %17 : vector<8xf32> to vector<8x1xf32>
    %19 = vector.broadcast %18 : vector<8x1xf32> to vector<8x4xf32>
    %20 = arith.subf %2, %19 : vector<8x4xf32>
    %21 = math.exp %20 : vector<8x4xf32>
    %cst_5 = arith.constant 0.000000e+00 : f32
    %22 = vector.broadcast %cst_5 : f32 to vector<8x4xf32>
    %23 = arith.select %16, %21, %22 : vector<8x4xi1>, vector<8x4xf32>
    %cst_6 = arith.constant dense<0.000000e+00> : vector<8xf32>
    %24 = vector.multi_reduction <add>, %23, %cst_6 [1] : vector<8x4xf32> to vector<8xf32>
    %25 = vector.shape_cast %24 : vector<8xf32> to vector<8x1xf32>
    %cst_7 = arith.constant dense<0.000000e+00> : vector<8xf32>
    %26 = vector.multi_reduction <add>, %21, %cst_7 [1] : vector<8x4xf32> to vector<8xf32>
    %27 = vector.shape_cast %26 : vector<8xf32> to vector<8x1xf32>
    %28 = math.log %25 : vector<8x1xf32>
    %29 = arith.addf %28, %18 : vector<8x1xf32>
    %c0_8 = arith.constant 0 : index
    %c0_9 = arith.constant 0 : index
    %30 = vector.load %arg3[%c0_8, %c0_9] : memref<8x1xf32, #tpu.memory_space<vmem>>, vector<8x1xf32>
    tpu.vector_store %arg3[%c0_8, %c0_9], %29 {strides = array<i32>} : memref<8x1xf32, #tpu.memory_space<vmem>>, vector<8x1xf32>,
    %31 = math.log %27 : vector<8x1xf32>
    %32 = arith.addf %31, %18 : vector<8x1xf32>
    %c0_10 = arith.constant 0 : index
    %c0_11 = arith.constant 0 : index
    %33 = vector.load %arg4[%c0_10, %c0_11] : memref<8x1xf32, #tpu.memory_space<vmem>>, vector<8x1xf32>
    tpu.vector_store %arg4[%c0_10, %c0_11], %32 {strides = array<i32>} : memref<8x1xf32, #tpu.memory_space<vmem>>, vector<8x1xf32>,
    %cst_12 = arith.constant dense<0xFF800000> : vector<1xf32>
    %34 = vector.multi_reduction <maximumf>, %18, %cst_12 [0] : vector<8x1xf32> to vector<1xf32>
    %35 = vector.shape_cast %34 : vector<1xf32> to vector<1x1xf32>
    %36 = vector.broadcast %35 : vector<1x1xf32> to vector<8x1xf32>
    %37 = arith.subf %18, %36 : vector<8x1xf32>
    %38 = math.exp %37 : vector<8x1xf32>
    %39 = vector.broadcast %38 : vector<8x1xf32> to vector<8x4xf32>
    %40 = arith.mulf %21, %39 : vector<8x4xf32>
    %cst_13 = arith.constant dense<0.000000e+00> : vector<4xf32>
    %41 = vector.multi_reduction <add>, %40, %cst_13 [0] : vector<8x4xf32> to vector<4xf32>
    %42 = vector.shape_cast %41 : vector<4xf32> to vector<1x4xf32>
    %43 = math.log %42 : vector<1x4xf32>
    %44 = vector.broadcast %35 : vector<1x1xf32> to vector<1x4xf32>
    %45 = arith.addf %43, %44 : vector<1x4xf32>
    %46 = vector.shape_cast %45 : vector<1x4xf32> to vector<1x4xf32>
    %47 = vector.broadcast %46 : vector<1x4xf32> to vector<8x4xf32>
    %c0_14 = arith.constant 0 : index
    %c0_15 = arith.constant 0 : index
    %48 = vector.load %arg5[%c0_14, %c0_15] : memref<8x4xf32, #tpu.memory_space<vmem>>, vector<8x4xf32>
    tpu.vector_store %arg5[%c0_14, %c0_15], %47 {strides = array<i32>} : memref<8x4xf32, #tpu.memory_space<vmem>>, vector<8x4xf32>,
    return
  }
  func.func @transform_0(%arg0: i32) -> (i32, i32) {
    %c0_i32 = arith.constant 0 : i32
    %c0_i32_0 = arith.constant 0 : i32
    return %arg0, %c0_i32 : i32, i32
  }
  func.func @transform_1(%arg0: i32) -> (i32, i32) {
    %c0_i32 = arith.constant 0 : i32
    %c0_i32_0 = arith.constant 0 : i32
    %c0_i32_1 = arith.constant 0 : i32
    return %c0_i32, %c0_i32_0 : i32, i32
  }
  func.func @transform_2(%arg0: i32) -> (i32, i32) {
    %c0_i32 = arith.constant 0 : i32
    %c0_i32_0 = arith.constant 0 : i32
    return %arg0, %c0_i32 : i32, i32
  }
  func.func @transform_3(%arg0: i32) -> (i32, i32) {
    %c0_i32 = arith.constant 0 : i32
    %c0_i32_0 = arith.constant 0 : i32
    return %arg0, %c0_i32 : i32, i32
  }
  func.func @transform_4(%arg0: i32) -> (i32, i32) {
    %c0_i32 = arith.constant 0 : i32
    %c0_i32_0 = arith.constant 0 : i32
    return %arg0, %c0_i32 : i32, i32
  }
}

</mosaic_0001>

<llo_original>
// kernel: tpu_custom_call.1
$region0: #{tpu_custom_call.1}
  #allocation0 [shape = 'u32[]', space=smem, size = 0x4, offset = 0x4, fixed_abs, tag = 'smem constant byte address 0x4 - core index']
  #allocation1 [shape = 'u32[72,128]{1,0:T(1,128)}', space=vmem, size = 0x9000, scoped, tag = 'internal scratch']
  %s0 = inlined_call_operand.hbm [shape: f32[8,32], index: 0, kind: input, shape index: {}]
  %s1 = inlined_call_operand.hbm [shape: f32[4,32], index: 1, kind: input, shape index: {}]
  %s2 = inlined_call_operand.vmem [shape: f32[8,1], index: 2, kind: output, shape index: {0}]
  %s3 = inlined_call_operand.vmem [shape: f32[8,1], index: 3, kind: output, shape index: {1}]
  %s4 = inlined_call_operand.vmem [shape: f32[8,4], index: 4, kind: output, shape index: {2}]
  %5 = xla_tuple %s2, %s3, %s4
  %s6 = sld [smem:[#allocation0]]
  $region42: #{tpu_custom_call.1} parent=0
    _
  %s8 = ssub.s32 1, %s6
  %s9 = scalar_select 0, %s8, %s6
  $region1: #{tpu_custom_call.1} parent=0
    #allocation2 [shape = 'u8[4096]{0}', space=vmem, size = 0x1000, scoped, tag = 'input window, operand 0, single buffered']
    #allocation3 [shape = 's32[1]{0}', space=sflag, size = 0x4, scoped, tag = 'scoped memory for tpu_custom_call.1']
    #allocation4 [shape = 'u8[2048]{0}', space=vmem, size = 0x800, scoped, tag = 'input window, operand 1, single buffered']
    #allocation5 [shape = 's32[1]{0}', space=sflag, size = 0x4, scoped, tag = 'scoped memory for tpu_custom_call.1']
    %10 = vsyncpa [#allocation3], 0
    %11 = vsyncpa [#allocation5], 0
    // Predicated region
    $region2: #{tpu_custom_call.1} parent=1 // pred_check
      _
    $region3: #{tpu_custom_call.1} parent=1 // pred_check_branch
      %13 = sbr.rel (0) target = $region5
    $region4: #{tpu_custom_call.1} parent=1 // pred_region
      %15 = vsyncadd [#allocation3], 0
      %s17 = sshll.u32 %s0, 4
      %s18 = int_to_ptr.hbm [resolvable:$true] %s17
      %s19 = sshll.u32 [#allocation2], 4
      %s20 = int_to_ptr.vmem [resolvable:$true] %s19
      %22 = dma.hbm_to_vmem [thread:$0]  %s18, 128, %s20, [#allocation3]
    $region5: #{tpu_custom_call.1} parent=1 // pred_fallthru
      _
    // Predicated region
    $region6: #{tpu_custom_call.1} parent=1 // pred_check
      _
    $region7: #{tpu_custom_call.1} parent=1 // pred_check_branch
      %24 = sbr.rel (0) target = $region9
    $region8: #{tpu_custom_call.1} parent=1 // pred_region
      %26 = vsyncadd [#allocation5], 0
      %s28 = sshll.u32 %s1, 4
      %s29 = int_to_ptr.hbm [resolvable:$true] %s28
      %s30 = sshll.u32 [#allocation4], 4
      %s31 = int_to_ptr.vmem [resolvable:$true] %s30
      %33 = dma.hbm_to_vmem [thread:$0]  %s29, 64, %s31, [#allocation5]
    $region9: #{tpu_custom_call.1} parent=1 // pred_fallthru
      _
    // Predicated region
    $region10: #{tpu_custom_call.1} parent=1 // pred_check
      _
    $region11: #{tpu_custom_call.1} parent=1 // pred_check_branch
      %35 = sbr.rel (0) target = $region13
    $region12: #{tpu_custom_call.1} parent=1 // pred_region
      %37 = dma.done [#allocation3], 128
    $region13: #{tpu_custom_call.1} parent=1 // pred_fallthru
      _
    // Predicated region
    $region14: #{tpu_custom_call.1} parent=1 // pred_check
      _
    $region15: #{tpu_custom_call.1} parent=1 // pred_check_branch
      %39 = sbr.rel (0) target = $region17
    $region16: #{tpu_custom_call.1} parent=1 // pred_region
      %41 = dma.done [#allocation5], 64
    $region17: #{tpu_custom_call.1} parent=1 // pred_fallthru
      _
    %v42 = vld [vmem:[#allocation2] sm:$0xff]
    %v43 = vld [vmem:[#allocation4] sm:$0xf]
    %vm44 = vcmask 261120
    %v46 = vsel %vm44, %v42, 0
    %v49 = vsel %vm44, %v43, 0
    %51 = vmatpush.xpose.msra.mxu0 0.0
    %52 = vmatpush.xpose.msra.mxu0 0.0
    %53 = vmatpush.xpose.msra.mxu0 0.0
    %54 = vmatpush.xpose.msra.mxu0 0.0
    %55 = vmatpush.xpose.msra.mxu0 0.0
    %56 = vmatpush.xpose.msra.mxu0 0.0
    %57 = vmatpush.xpose.msra.mxu0 0.0
    %58 = vmatpush.xpose.msra.mxu0 0.0
    %59 = vmatpush.xpose.msra.mxu0 0.0
    %60 = vmatpush.xpose.msra.mxu0 0.0
    %61 = vmatpush.xpose.msra.mxu0 0.0
    %62 = vmatpush.xpose.msra.mxu0 0.0
    %63 = vmatpush.xpose.msra.mxu0 0.0
    %64 = vmatpush.xpose.msra.mxu0 0.0
    %65 = vmatpush.xpose.msra.mxu0 0.0
    %66 = vmatpush.xpose.msra.mxu0 %v49
    %67 = vmatmul.f32.gmra.mxu0 %v46
    %v68 = vpop.f32.mrf.mxu0
    %v69 = vadd.f32 0.0, %v68
    %70 = vdwg.mxu0
    %v71 = vlaneseq
    %v72 = vshrl.u32 %v71, 7
    %s73 = smul.u32 0, 8
    %v74 = vstv %s73
    %v75 = vadd.s32 %v72, %v74
    %v76 = vlaneseq
    %v77 = vand.u32 %v76, 127
    %v78 = vmul.u32 %v77, 2
    %vm79 = vcmp.ge.s32.totalorder %v75, %v78
    %v80 = vadd.s32 %v77, 1
    %v81 = vmul.u32 %v80, 2
    %vm82 = vcmp.lt.s32.totalorder %v75, %v81
    %vm83 = vmand %vm79, %vm82
    %vm84 = vcmask 31744
    %v85 = vsel %vm84, %v69, -inf
    %86 = vmax.xlane.f32.xlu0 %v85
    %v87 = vpop.xlane.xlu0 %86
    %v88 = vsub.f32 %v69, %v87
    %v89 = vmul.f32 %v88, 1.442695
    %v90 = vpow.pop %v89
    %v91 = vsel %vm83, %v90, 0.0
    %v92 = vsel %vm84, %v91, 0.0
    %93 = vadd.xlane.f32.xlu0 %v92
    %v94 = vpop.xlane.xlu0 %93
    %v95 = vsel %vm84, %v90, 0.0
    %96 = vadd.xlane.f32.xlu0 %v95
    %v97 = vpop.xlane.xlu0 %96
    %v98 = vlog2.pop %v94
    %v99 = vmul.f32 %v98, 0.6931472
    %v100 = vadd.f32 %v99, %v87
    %vm101 = vcmask 7168
    %102 = vst.msk [vmem:[%s2] sm:$0xff] %vm101, %v100
    %v103 = vlog2.pop %v97
    %v104 = vmul.f32 %v103, 0.6931472
    %v105 = vadd.f32 %v104, %v87
    %106 = vst.msk [vmem:[%s3] sm:$0xff] %vm101, %v105
    %v107 = vrot.slane %v87, 4
    %v108 = vmax.f32 %v87, %v107
    %v109 = vrot.slane %v108, 2
    %v110 = vmax.f32 %v108, %v109
    %v111 = vrot.slane %v110, 1
    %v112 = vmax.f32 %v110, %v111
    %v113 = vsub.f32 %v87, %v112
    %v114 = vmul.f32 %v113, 1.442695
    %v115 = vpow.pop %v114
    %v116 = vmul.f32 %v90, %v115
    %v117 = vsel %vm84, %v116, 0.0
    %v118 = vrot.slane %v117, 4
    %v119 = vadd.f32 %v117, %v118
    %v120 = vrot.slane %v119, 2
    %v121 = vadd.f32 %v119, %v120
    %v122 = vrot.slane %v121, 1
    %v123 = vadd.f32 %v121, %v122
    %v124 = vlog2.pop %v123
    %v125 = vmul.f32 %v124, 0.6931472
    %v126 = vadd.f32 %v125, %v112
    %127 = vst.msk [vmem:[%s4] sm:$0xff] %vm84, %v126
    // Predicated region
    $region18: #{tpu_custom_call.1} parent=1 // pred_check
      _
    $region19: #{tpu_custom_call.1} parent=1 // pred_check_branch
      %129 = sbr.rel (0) target = $region21
    $region20: #{tpu_custom_call.1} parent=1 // pred_region
      _
    $region21: #{tpu_custom_call.1} parent=1 // pred_fallthru
      _
    // Predicated region
    $region22: #{tpu_custom_call.1} parent=1 // pred_check
      _
    $region23: #{tpu_custom_call.1} parent=1 // pred_check_branch
      %131 = sbr.rel (0) target = $region25
    $region24: #{tpu_custom_call.1} parent=1 // pred_region
      _
    $region25: #{tpu_custom_call.1} parent=1 // pred_fallthru
      _
    // Predicated region
    $region26: #{tpu_custom_call.1} parent=1 // pred_check
      _
    $region27: #{tpu_custom_call.1} parent=1 // pred_check_branch
      %133 = sbr.rel (0) target = $region29
    $region28: #{tpu_custom_call.1} parent=1 // pred_region
      _
    $region29: #{tpu_custom_call.1} parent=1 // pred_fallthru
      _
    // Predicated region
    $region30: #{tpu_custom_call.1} parent=1 // pred_check
      _
    $region31: #{tpu_custom_call.1} parent=1 // pred_check_branch
      %135 = sbr.rel (0) target = $region33
    $region32: #{tpu_custom_call.1} parent=1 // pred_region
      _
    $region33: #{tpu_custom_call.1} parent=1 // pred_fallthru
      _
    // Predicated region
    $region34: #{tpu_custom_call.1} parent=1 // pred_check
      _
    $region35: #{tpu_custom_call.1} parent=1 // pred_check_branch
      %137 = sbr.rel (0) target = $region37
    $region36: #{tpu_custom_call.1} parent=1 // pred_region
      _
    $region37: #{tpu_custom_call.1} parent=1 // pred_fallthru
      _
    // Predicated region
    $region38: #{tpu_custom_call.1} parent=1 // pred_check
      _
    $region39: #{tpu_custom_call.1} parent=1 // pred_check_branch
      %139 = sbr.rel (0) target = $region41
    $region40: #{tpu_custom_call.1} parent=1 // pred_region
      _
    $region41: #{tpu_custom_call.1} parent=1 // pred_fallthru
      _
    %140 = vsyncpa [#allocation3], 1
    %141 = vsyncpa [#allocation5], 1

</llo_original>
